<compile_context>
chip_gen: v5e
topology: v5e:2x2
jax: 0.10.0
libtpu: 0.0.40
codegen_flags: <defaults>
</compile_context>

<pallas_src>
import jax
import jax.numpy as jnp
from jax.experimental import pallas as pl
from jax.experimental.pallas import tpu as pltpu


# ----------------------------------------------------------------------------
# One-time parameter preparation (hoisted out of the per-call path).
# ----------------------------------------------------------------------------
def prepare_params(params, weight_dtype=jnp.bfloat16, layer0_k_tile=None):
    """Quantize + transpose + pack the nn.Linear parameters ONCE.

    params        : list of (W, b) with W: (out, in), b: (out,)  [PyTorch layout]
    weight_dtype  : storage dtype of the streamed weights (bf16 by default).
    layer0_k_tile : if set, pad layer-0's K to a multiple of it and use the
                    K-tiled (gridded, double-buffered) layer-0 kernel.  Use for
                    realistic image-feature sizes where W0 does not comfortably
                    fit in VMEM (binding first on v7x's 64 MiB/TC).
    """
    num_layers = len(params)
    assert num_layers >= 1
    out_dim = int(params[-1][0].shape[0])
    k_total = int(params[0][0].shape[1])

    # (out, in) -> (in, out): canonical (M,K)x(K,N) MXU form, transposed once.
    w0 = jnp.asarray(params[0][0]).T.astype(weight_dtype)                 # (K, N)
    biases = jnp.stack([jnp.asarray(b, jnp.float32) for _, b in params])  # (L, N)
    w_rest = None
    if num_layers > 1:
        w_rest = jnp.stack([jnp.asarray(w).T.astype(weight_dtype)
                            for w, _ in params[1:]])                      # (L-1, N, N)

    k_padded = k_total
    if layer0_k_tile is not None:
        k_padded = ((k_total + layer0_k_tile - 1) // layer0_k_tile) * layer0_k_tile
        if k_padded != k_total:
            w0 = jnp.pad(w0, ((0, k_padded - k_total), (0, 0)))           # zero rows

    return dict(w0=w0, w_rest=w_rest, biases=biases, num_layers=num_layers,
                out_dim=out_dim, k_total=k_total, k_padded=k_padded,
                layer0_k_tile=layer0_k_tile, weight_dtype=weight_dtype)


# ----------------------------------------------------------------------------
# Shared helpers.
# ----------------------------------------------------------------------------
def _vmem_limit_bytes(bytes_needed):
    """~75% of this generation's VMEM (≈48 MiB on v7x, ≈96 MiB on v5e/v6e), but
    no more than a generous multiple of what this call actually needs."""
    capacity = 128 * 2**20
    try:
        capacity = int(pltpu.get_tpu_info().vmem_capacity_bytes)
    except Exception:
        pass  # conservative default if the query is unavailable
    return int(min(capacity * 3 // 4, max(32 * 2**20, 4 * int(bytes_needed))))


def _cost_estimate(prepped, batch):
    n = prepped["out_dim"]
    flops = 2 * batch * prepped["k_total"] * n
    flops += 2 * batch * n * n * (prepped["num_layers"] - 1)
    bytes_accessed = prepped["w0"].size * prepped["w0"].dtype.itemsize
    bytes_accessed += prepped["biases"].size * 4
    bytes_accessed += batch * (prepped["k_total"] + n) * 4
    if prepped["w_rest"] is not None:
        bytes_accessed += prepped["w_rest"].size * prepped["w_rest"].dtype.itemsize
    return pl.CostEstimate(flops=int(flops), transcendentals=int(batch * n),
                           bytes_accessed=int(bytes_accessed))


# ----------------------------------------------------------------------------
# Path 1: gridless kernel (everything VMEM-resident; right for small shapes).
# ----------------------------------------------------------------------------
def _make_gridless_kernel(num_layers, slab_offsets):
    num_slabs = len(slab_offsets) - 1

    def kernel(*refs):
        x_refs = refs[:num_slabs]
        w0_ref = refs[num_slabs]
        idx = num_slabs + 1
        w_rest_ref = None
        if num_layers > 1:
            w_rest_ref = refs[idx]
            idx += 1
        b_ref = refs[idx]
        o_ref = refs[idx + 1]

        w_dtype = w0_ref.dtype
        b_all = b_ref[...]                                    # (L, N) f32, tiny

        # Layer 0: fused flatten+concat as per-slab partial-K dots against
        # static ROW slices of the pre-transposed (K, N) weight (no XLU work).
        acc = None
        for s in range(num_slabs):
            xs = x_refs[s][...].astype(w_dtype)               # (B, K_s)
            ws = w0_ref[slab_offsets[s]:slab_offsets[s + 1], :]   # (K_s, N)
            d = jnp.dot(xs, ws, preferred_element_type=jnp.float32)
            acc = d if acc is None else acc + d
        h = jnp.maximum(acc + b_all[0:1, :], 0.0)             # F.relu

        # Layers 1 .. L-1 (ReLU on every layer, as in the PyTorch forward).
        for i in range(1, num_layers):
            w = w_rest_ref[i - 1]                             # (N, N)
            d = jnp.dot(h.astype(w_dtype), w, preferred_element_type=jnp.float32)
            h = jnp.maximum(d + b_all[i:i + 1, :], 0.0)

        o_ref[...] = jnp.tanh(h)                              # nn.Tanh()

    return kernel


def _forward_gridless(slabs, prepped):
    batch = slabs[0].shape[0]
    out_dim = prepped["out_dim"]
    num_layers = prepped["num_layers"]

    offsets = [0]
    for s in slabs:
        offsets.append(offsets[-1] + int(s.shape[1]))
    assert offsets[-1] == prepped["k_total"]

    kernel_args = list(slabs) + [prepped["w0"]]
    if prepped["w_rest"] is not None:
        kernel_args.append(prepped["w_rest"])
    kernel_args.append(prepped["biases"])

    bytes_needed = sum(int(a.size) * a.dtype.itemsize for a in kernel_args)
    bytes_needed += batch * out_dim * 4

    vmem_spec = pl.BlockSpec(memory_space=pltpu.MemorySpace.VMEM)
    return pl.pallas_call(
        _make_gridless_kernel(num_layers, offsets),
        out_shape=jax.ShapeDtypeStruct((batch, out_dim), jnp.float32),
        in_specs=[vmem_spec] * len(kernel_args),
        out_specs=vmem_spec,
        cost_estimate=_cost_estimate(prepped, batch),
        compiler_params=pltpu.CompilerParams(
            vmem_limit_bytes=_vmem_limit_bytes(bytes_needed)),
    )(*kernel_args)


# ----------------------------------------------------------------------------
# Path 2: K-tiled layer-0 kernel (1-D "arbitrary" grid over K, f32 accumulator,
# double-buffered weight stream).  Needed once W0 outgrows VMEM (v7x first).
# ----------------------------------------------------------------------------
def _make_ktiled_kernel(num_layers):
    def kernel(*refs):
        x_ref, w0_ref = refs[0], refs[1]
        idx = 2
        w_rest_ref = None
        if num_layers > 1:
            w_rest_ref = refs[idx]
            idx += 1
        b_ref = refs[idx]
        o_ref = refs[idx + 1]
        acc_ref = refs[idx + 2]

        k = pl.program_id(0)

        @pl.when(k == 0)
        def _():
            acc_ref[...] = jnp.zeros_like(acc_ref)

        acc_ref[...] += jnp.dot(x_ref[...].astype(w0_ref.dtype), w0_ref[...],
                                preferred_element_type=jnp.float32)

        @pl.when(k == pl.num_programs(0) - 1)
        def _():
            b_all = b_ref[...]                                # (L, N) f32
            h = jnp.maximum(acc_ref[...] + b_all[0:1, :], 0.0)
            for i in range(1, num_layers):
                w = w_rest_ref[i - 1]
                d = jnp.dot(h.astype(w.dtype), w, preferred_element_type=jnp.float32)
                h = jnp.maximum(d + b_all[i:i + 1, :], 0.0)
            o_ref[...] = jnp.tanh(h)

    return kernel


def _forward_ktiled(slabs, prepped):
    batch = slabs[0].shape[0]
    out_dim = prepped["out_dim"]
    num_layers = prepped["num_layers"]
    tk = prepped["layer0_k_tile"]
    k_padded = prepped["k_padded"]
    w_itemsize = prepped["w0"].dtype.itemsize

    # TODO(synk): the activation concat+pad could itself be fused into the
    # tiled kernel via scalar-prefetch slab offsets; kept in the wrapper since
    # it is O(B*K) activations vs the O(K*N) weight stream the grid hides.
    x = slabs[0] if len(slabs) == 1 else jnp.concatenate(slabs, axis=1)
    if k_padded != prepped["k_total"]:
        x = jnp.pad(x, ((0, 0), (0, k_padded - prepped["k_total"])))

    kernel_args = [x, prepped["w0"]]
    if prepped["w_rest"] is not None:
        kernel_args.append(prepped["w_rest"])
    kernel_args.append(prepped["biases"])

    in_specs = [
        pl.BlockSpec((batch, tk), lambda k: (0, k)),
        # Default double-buffered weight stream; raise via pipeline_mode=
        # pl.Buffered(3) if the DMA is still exposed on a given generation.
        pl.BlockSpec((tk, out_dim), lambda k: (k, 0)),
    ]
    if prepped["w_rest"] is not None:
        in_specs.append(pl.BlockSpec((num_layers - 1, out_dim, out_dim),
                                     lambda k: (0, 0, 0)))
    in_specs.append(pl.BlockSpec((num_layers, out_dim), lambda k: (0, 0)))

    # Per-step working set: double-buffered x and W0 tiles + resident extras.
    working = 2 * (batch * tk * 4 + tk * out_dim * w_itemsize)
    working += batch * out_dim * (4 + 4)  # output block + f32 accumulator
    working += prepped["biases"].size * 4
    if prepped["w_rest"] is not None:
        working += prepped["w_rest"].size * w_itemsize

    # TODO(synk): for large batch add a "parallel" grid axis over batch rows so
    # both v7x TensorCores get work; pointless at B=2.
    return pl.pallas_call(
        _make_ktiled_kernel(num_layers),
        out_shape=jax.ShapeDtypeStruct((batch, out_dim), jnp.float32),
        grid=(k_padded // tk,),
        in_specs=in_specs,
        out_specs=pl.BlockSpec((batch, out_dim), lambda k: (0, 0)),
        scratch_shapes=[pltpu.VMEM((batch, out_dim), jnp.float32)],
        cost_estimate=_cost_estimate(prepped, batch),
        compiler_params=pltpu.CompilerParams(
            dimension_semantics=("arbitrary",),
            vmem_limit_bytes=_vmem_limit_bytes(working)),
    )(*kernel_args)


# ----------------------------------------------------------------------------
# Public forward.
# ----------------------------------------------------------------------------
def flexible_multilayer_flow_combiner(image_features, text_z, prepped):
    """Forward pass matching the PyTorch module.

    image_features : list of (B, C, H, W) arrays (NCHW).
    text_z         : (B, text_latent_dim).
    prepped        : output of prepare_params() -- call that ONCE, not per step.
    Returns (B, combined_latent_dim) float32.
    """
    slabs = [f.reshape(f.shape[0], -1) for f in image_features]
    if slabs:
        # Fold the tiny text slab into the adjacent (last) image slab: same
        # column order as torch.cat(flat_features + [text_z]), one fewer DMA,
        # and no masked 32-lane operand / padded extra MXU dot in layer 0.
        slabs[-1] = jnp.concatenate([slabs[-1], text_z], axis=1)
    else:
        slabs = [text_z]

    if prepped["layer0_k_tile"] is None:
        return _forward_gridless(slabs, prepped)
    return _forward_ktiled(slabs, prepped)


# ----------------------------------------------------------------------------
# Init + reference (for the self-test).
# ----------------------------------------------------------------------------
def init_params(key, image_feature_shapes, text_latent_dim, combined_latent_dim,
                num_layers=3):
    """Deterministic nn.Linear-style init (uniform +/- 1/sqrt(fan_in))."""
    total_image_features = sum(c * h * w for (c, h, w) in image_feature_shapes)
    params = []
    in_dim = total_image_features + text_latent_dim
    for _ in range(num_layers):
        key, kw, kb = jax.random.split(key, 3)
        bound = 1.0 / jnp.sqrt(jnp.float32(in_dim))
        w = jax.random.uniform(kw, (combined_latent_dim, in_dim), jnp.float32,
                               minval=-bound, maxval=bound)
        b = jax.random.uniform(kb, (combined_latent_dim,), jnp.float32,
                               minval=-bound, maxval=bound)
        params.append((w, b))
        in_dim = combined_latent_dim
    return params


def _reference_forward(image_features, text_z, params, weight_dtype=jnp.bfloat16):
    """Pure-JAX reference mirroring the PyTorch forward with the same bf16
    quantization of dot inputs that the kernel uses (f32 accumulation)."""
    flat = [f.reshape(f.shape[0], -1) for f in image_features]
    x = jnp.concatenate(flat + [text_z], axis=1)
    for (w, b) in params:
        wq = jnp.asarray(w).astype(weight_dtype).astype(jnp.float32)
        xq = x.astype(weight_dtype).astype(jnp.float32)
        x = jnp.maximum(xq @ wq.T + jnp.asarray(b, jnp.float32), 0.0)
    return jnp.tanh(x)


if __name__ == "__main__":
    key = jax.random.PRNGKey(0)

    # Small shapes consistent with the module.
    image_feature_shapes = [(4, 16, 16), (8, 8, 8)]   # per-sample (C, H, W)
    text_latent_dim = 32
    combined_latent_dim = 128
    num_layers = 3
    batch = 2

    key, k0, k1, k2, kp = jax.random.split(key, 5)
    image_features = [
        jax.random.normal(k0, (batch,) + image_feature_shapes[0], jnp.float32),
        jax.random.normal(k1, (batch,) + image_feature_shapes[1], jnp.float32),
    ]
    text_z = jax.random.normal(k2, (batch, text_latent_dim), jnp.float32)

    params = init_params(kp, image_feature_shapes, text_latent_dim,
                         combined_latent_dim, num_layers)
    ref = _reference_forward(image_features, text_z, params)

    # Path 1: gridless (small-shape) kernel.
    prepped = prepare_params(params)                   # one-time prep
    out = jax.block_until_ready(
        flexible_multilayer_flow_combiner(image_features, text_z, prepped))
    assert out.shape == (batch, combined_latent_dim)
    assert jnp.allclose(out, ref, atol=2e-3, rtol=2e-3), (
        float(jnp.max(jnp.abs(out - ref))))

    # Path 2: K-tiled layer-0 kernel (the structural variant for realistic
    # image-feature sizes, esp. v7x's 64 MiB VMEM) -- verified on the same data.
    prepped_tiled = prepare_params(params, layer0_k_tile=512)
    out_tiled = jax.block_until_ready(
        flexible_multilayer_flow_combiner(image_features, text_z, prepped_tiled))
    assert jnp.allclose(out_tiled, ref, atol=2e-3, rtol=2e-3), (
        float(jnp.max(jnp.abs(out_tiled - ref))))

    print("KERNEL_OK")
</pallas_src>

<mosaic_0001>
module attributes {stable_mosaic.version = 11 : i64} {
  func.func @kernel(%arg0: memref<2x1024xf32, #tpu.memory_space<vmem>>, %arg1: memref<2x544xf32, #tpu.memory_space<vmem>>, %arg2: memref<1568x128xbf16, #tpu.memory_space<vmem>>, %arg3: memref<2x128x128xbf16, #tpu.memory_space<vmem>>, %arg4: memref<3x128xf32, #tpu.memory_space<vmem>>, %arg5: memref<2x128xf32, #tpu.memory_space<vmem>>) attributes {dimension_semantics = [], scalar_prefetch = 0 : i64, scratch_operands = 0 : i64, tpu.core_type = #tpu.core_type<tc>} {
    %c0 = arith.constant 0 : index
    %c0_0 = arith.constant 0 : index
    %0 = vector.load %arg4[%c0, %c0_0] : memref<3x128xf32, #tpu.memory_space<vmem>>, vector<3x128xf32>
    %c0_1 = arith.constant 0 : index
    %c0_2 = arith.constant 0 : index
    %1 = vector.load %arg0[%c0_1, %c0_2] : memref<2x1024xf32, #tpu.memory_space<vmem>>, vector<2x1024xf32>
    %2 = arith.truncf %1 : vector<2x1024xf32> to vector<2x1024xbf16>
    %c0_3 = arith.constant 0 : index
    %c0_4 = arith.constant 0 : index
    %3 = vector.load %arg2[%c0_3, %c0_4] : memref<1568x128xbf16, #tpu.memory_space<vmem>>, vector<1024x128xbf16>
    %cst = arith.constant dense<0.000000e+00> : vector<2x128xf32>
    %4 = tpu.matmul %2, %3, %cst {dimension_numbers = #tpu.dot_dimension_numbers<[1], [0], [0], [1], [0, 0, 1, 1], [], []>} : vector<2x1024xbf16>, vector<1024x128xbf16>, vector<2x128xf32> -> vector<2x128xf32>
    %c0_5 = arith.constant 0 : index
    %c0_6 = arith.constant 0 : index
    %5 = vector.load %arg1[%c0_5, %c0_6] : memref<2x544xf32, #tpu.memory_space<vmem>>, vector<2x544xf32>
    %6 = arith.truncf %5 : vector<2x544xf32> to vector<2x544xbf16>
    %c1024 = arith.constant 1024 : index
    %c0_7 = arith.constant 0 : index
    %7 = vector.load %arg2[%c1024, %c0_7] : memref<1568x128xbf16, #tpu.memory_space<vmem>>, vector<544x128xbf16>
    %cst_8 = arith.constant dense<0.000000e+00> : vector<2x128xf32>
    %8 = tpu.matmul %6, %7, %cst_8 {dimension_numbers = #tpu.dot_dimension_numbers<[1], [0], [0], [1], [0, 0, 1, 1], [], []>} : vector<2x544xbf16>, vector<544x128xbf16>, vector<2x128xf32> -> vector<2x128xf32>
    %9 = arith.addf %4, %8 : vector<2x128xf32>
    %10 = vector.extract_strided_slice %0 {offsets = [0, 0], sizes = [1, 128], strides = [1, 1]} : vector<3x128xf32> to vector<1x128xf32>
    %11 = vector.broadcast %10 : vector<1x128xf32> to vector<2x128xf32>
    %12 = arith.addf %9, %11 : vector<2x128xf32>
    %cst_9 = arith.constant 0.000000e+00 : f32
    %13 = vector.broadcast %cst_9 : f32 to vector<2x128xf32>
    %14 = arith.maximumf %12, %13 : vector<2x128xf32>
    %c0_10 = arith.constant 0 : index
    %c0_11 = arith.constant 0 : index
    %c0_12 = arith.constant 0 : index
    %15 = vector.load %arg3[%c0_10, %c0_11, %c0_12] : memref<2x128x128xbf16, #tpu.memory_space<vmem>>, vector<1x128x128xbf16>
    %16 = vector.shape_cast %15 : vector<1x128x128xbf16> to vector<128x128xbf16>
    %17 = arith.truncf %14 : vector<2x128xf32> to vector<2x128xbf16>
    %cst_13 = arith.constant dense<0.000000e+00> : vector<2x128xf32>
    %18 = tpu.matmul %17, %16, %cst_13 {dimension_numbers = #tpu.dot_dimension_numbers<[1], [0], [0], [1], [0, 0, 1, 1], [], []>} : vector<2x128xbf16>, vector<128x128xbf16>, vector<2x128xf32> -> vector<2x128xf32>
    %19 = vector.extract_strided_slice %0 {offsets = [1, 0], sizes = [1, 128], strides = [1, 1]} : vector<3x128xf32> to vector<1x128xf32>
    %20 = vector.broadcast %19 : vector<1x128xf32> to vector<2x128xf32>
    %21 = arith.addf %18, %20 : vector<2x128xf32>
    %cst_14 = arith.constant 0.000000e+00 : f32
    %22 = vector.broadcast %cst_14 : f32 to vector<2x128xf32>
    %23 = arith.maximumf %21, %22 : vector<2x128xf32>
    %c1 = arith.constant 1 : index
    %c0_15 = arith.constant 0 : index
    %c0_16 = arith.constant 0 : index
    %24 = vector.load %arg3[%c1, %c0_15, %c0_16] : memref<2x128x128xbf16, #tpu.memory_space<vmem>>, vector<1x128x128xbf16>
    %25 = vector.shape_cast %24 : vector<1x128x128xbf16> to vector<128x128xbf16>
    %26 = arith.truncf %23 : vector<2x128xf32> to vector<2x128xbf16>
    %cst_17 = arith.constant dense<0.000000e+00> : vector<2x128xf32>
    %27 = tpu.matmul %26, %25, %cst_17 {dimension_numbers = #tpu.dot_dimension_numbers<[1], [0], [0], [1], [0, 0, 1, 1], [], []>} : vector<2x128xbf16>, vector<128x128xbf16>, vector<2x128xf32> -> vector<2x128xf32>
    %28 = vector.extract_strided_slice %0 {offsets = [2, 0], sizes = [1, 128], strides = [1, 1]} : vector<3x128xf32> to vector<1x128xf32>
    %29 = vector.broadcast %28 : vector<1x128xf32> to vector<2x128xf32>
    %30 = arith.addf %27, %29 : vector<2x128xf32>
    %cst_18 = arith.constant 0.000000e+00 : f32
    %31 = vector.broadcast %cst_18 : f32 to vector<2x128xf32>
    %32 = arith.maximumf %30, %31 : vector<2x128xf32>
    %33 = math.tanh %32 : vector<2x128xf32>
    %c0_19 = arith.constant 0 : index
    %c0_20 = arith.constant 0 : index
    %34 = vector.load %arg5[%c0_19, %c0_20] : memref<2x128xf32, #tpu.memory_space<vmem>>, vector<2x128xf32>
    tpu.vector_store %arg5[%c0_19, %c0_20], %33 {strides = array<i32>} : memref<2x128xf32, #tpu.memory_space<vmem>>, vector<2x128xf32>,
    return
  }
}

</mosaic_0001>

<llo_original>
// kernel: tpu_custom_call.1
$region0: #{tpu_custom_call.1}
  #allocation0 [shape = 'u32[]', space=smem, size = 0x4, offset = 0x4, fixed_abs, tag = 'smem constant byte address 0x4 - core index']
  #allocation1 [shape = 'u32[72,128]{1,0:T(1,128)}', space=vmem, size = 0x9000, scoped, tag = 'internal scratch']
  %s0 = inlined_call_operand.hbm [shape: f32[2,1024], index: 0, kind: input, shape index: {}]
  %s1 = inlined_call_operand.hbm [shape: f32[2,544], index: 1, kind: input, shape index: {}]
  %s2 = inlined_call_operand.hbm [shape: bf16[1568,128], index: 2, kind: input, shape index: {}]
  %s3 = inlined_call_operand.hbm [shape: bf16[2,128,128], index: 3, kind: input, shape index: {}]
  %s4 = inlined_call_operand.hbm [shape: f32[3,128], index: 4, kind: input, shape index: {}]
  %s5 = inlined_call_operand.hbm [shape: f32[2,128], index: 5, kind: output, shape index: {}]
  %s6 = sld [smem:[#allocation0]]
  $region50: #{tpu_custom_call.1} parent=0
    _
  %s8 = ssub.s32 1, %s6
  %s9 = scalar_select 0, %s8, %s6
  $region1: #{tpu_custom_call.1} parent=0
    #allocation2 [shape = 'u8[8192]{0}', space=vmem, size = 0x2000, scoped, tag = 'input window, operand 0, single buffered']
    #allocation3 [shape = 's32[1]{0}', space=sflag, size = 0x4, scoped, tag = 'scoped memory for tpu_custom_call.1']
    #allocation4 [shape = 's32[1]{0}', space=sflag, size = 0x4, scoped, tag = 'scoped memory for tpu_custom_call.1']
    #allocation5 [shape = 'u8[5120]{0}', space=vmem, size = 0x1400, scoped, tag = 'input window, operand 1, single buffered']
    #allocation6 [shape = 's32[1]{0}', space=sflag, size = 0x4, scoped, tag = 'scoped memory for tpu_custom_call.1']
    #allocation7 [shape = 'u8[401408]{0}', space=vmem, size = 0x62000, scoped, tag = 'input window, operand 2, single buffered']
    #allocation8 [shape = 'u8[65536]{0}', space=vmem, size = 0x10000, scoped, tag = 'input window, operand 3, single buffered']
    #allocation9 [shape = 's32[1]{0}', space=sflag, size = 0x4, scoped, tag = 'scoped memory for tpu_custom_call.1']
    #allocation10 [shape = 'u8[2048]{0}', space=vmem, size = 0x800, scoped, tag = 'input window, operand 4, single buffered']
    #allocation11 [shape = 'u8[1024]{0}', space=vmem, size = 0x400, scoped, tag = 'output window, operand 0, single buffered']
    %10 = vsyncpa [#allocation3], 0
    %11 = vsyncpa [#allocation6], 0
    %12 = vsyncpa [#allocation9], 0
    %13 = vsyncpa [#allocation4], 0
    // Predicated region
    $region2: #{tpu_custom_call.1} parent=1 // pred_check
      _
    $region3: #{tpu_custom_call.1} parent=1 // pred_check_branch
      %15 = sbr.rel (0) target = $region5
    $region4: #{tpu_custom_call.1} parent=1 // pred_region
      %17 = vsyncadd [#allocation3], 0
      %s19 = sshll.u32 %s0, 4
      %s20 = int_to_ptr.hbm [resolvable:$true] %s19
      %s21 = sshll.u32 [#allocation2], 4
      %s22 = int_to_ptr.vmem [resolvable:$true] %s21
      %24 = dma.hbm_to_vmem [thread:$0]  %s20, 256, %s22, [#allocation3]
    $region5: #{tpu_custom_call.1} parent=1 // pred_fallthru
      _
    // Predicated region
    $region6: #{tpu_custom_call.1} parent=1 // pred_check
      _
    $region7: #{tpu_custom_call.1} parent=1 // pred_check_branch
      %26 = sbr.rel (0) target = $region9
    $region8: #{tpu_custom_call.1} parent=1 // pred_region
      %28 = vsyncadd [#allocation6], 0
      %s30 = sshll.u32 %s1, 4
      %s31 = int_to_ptr.hbm [resolvable:$true] %s30
      %s32 = sshll.u32 [#allocation5], 4
      %s33 = int_to_ptr.vmem [resolvable:$true] %s32
      %35 = dma.hbm_to_vmem [thread:$0]  %s31, 160, %s33, [#allocation6]
    $region9: #{tpu_custom_call.1} parent=1 // pred_fallthru
      _
    // Predicated region
    $region10: #{tpu_custom_call.1} parent=1 // pred_check
      _
    $region11: #{tpu_custom_call.1} parent=1 // pred_check_branch
      %37 = sbr.rel (0) target = $region13
    $region12: #{tpu_custom_call.1} parent=1 // pred_region
      %39 = vsyncadd [#allocation6], 0
      %s40 = sshll.u32 %s2, 4
      %s41 = int_to_ptr.hbm [resolvable:$true] %s40
      %s42 = sshll.u32 [#allocation7], 4
      %s43 = int_to_ptr.vmem [resolvable:$true] %s42
      %48 = dma.hbm_to_vmem [thread:$0]  %s41, 12544, %s43, [#allocation6], 64, 64, 4
    $region13: #{tpu_custom_call.1} parent=1 // pred_fallthru
      _
    // Predicated region
    $region14: #{tpu_custom_call.1} parent=1 // pred_check
      _
    $region15: #{tpu_custom_call.1} parent=1 // pred_check_branch
      %50 = sbr.rel (0) target = $region17
    $region16: #{tpu_custom_call.1} parent=1 // pred_region
      %52 = vsyncadd [#allocation9], 0
      %s53 = sshll.u32 %s3, 4
      %s54 = int_to_ptr.hbm [resolvable:$true] %s53
      %s55 = sshll.u32 [#allocation8], 4
      %s56 = int_to_ptr.vmem [resolvable:$true] %s55
      %61 = dma.hbm_to_vmem [thread:$0]  %s54, 2048, %s56, [#allocation9], 64, 64, 4
    $region17: #{tpu_custom_call.1} parent=1 // pred_fallthru
      _
    // Predicated region
    $region18: #{tpu_custom_call.1} parent=1 // pred_check
      _
    $region19: #{tpu_custom_call.1} parent=1 // pred_check_branch
      %63 = sbr.rel (0) target = $region21
    $region20: #{tpu_custom_call.1} parent=1 // pred_region
      %65 = vsyncadd [#allocation9], 0
      %s67 = sshll.u32 %s4, 4
      %s68 = int_to_ptr.hbm [resolvable:$true] %s67
      %s69 = sshll.u32 [#allocation10], 4
      %s70 = int_to_ptr.vmem [resolvable:$true] %s69
      %72 = dma.hbm_to_vmem [thread:$0]  %s68, 64, %s70, [#allocation9]
    $region21: #{tpu_custom_call.1} parent=1 // pred_fallthru
      _
    // Predicated region
    $region22: #{tpu_custom_call.1} parent=1 // pred_check
      _
    $region23: #{tpu_custom_call.1} parent=1 // pred_check_branch
      %74 = sbr.rel (0) target = $region25
    $region24: #{tpu_custom_call.1} parent=1 // pred_region
      %76 = dma.done [#allocation3], 256
    $region25: #{tpu_custom_call.1} parent=1 // pred_fallthru
      _
    // Predicated region
    $region26: #{tpu_custom_call.1} parent=1 // pred_check
      _
    $region27: #{tpu_custom_call.1} parent=1 // pred_check_branch
      %78 = sbr.rel (0) target = $region29
    $region28: #{tpu_custom_call.1} parent=1 // pred_region
      %80 = dma.done [#allocation6], 160
    $region29: #{tpu_custom_call.1} parent=1 // pred_fallthru
      _
    // Predicated region
    $region30: #{tpu_custom_call.1} parent=1 // pred_check
      _
    $region31: #{tpu_custom_call.1} parent=1 // pred_check_branch
      %82 = sbr.rel (0) target = $region33
    $region32: #{tpu_custom_call.1} parent=1 // pred_region
      %84 = dma.done [#allocation6], 12544
    $region33: #{tpu_custom_call.1} parent=1 // pred_fallthru
      _
    // Predicated region
    $region34: #{tpu_custom_call.1} parent=1 // pred_check
      _
    $region35: #{tpu_custom_call.1} parent=1 // pred_check_branch
      %86 = sbr.rel (0) target = $region37
    $region36: #{tpu_custom_call.1} parent=1 // pred_region
      %88 = dma.done [#allocation9], 2048
    $region37: #{tpu_custom_call.1} parent=1 // pred_fallthru
      _
    // Predicated region
    $region38: #{tpu_custom_call.1} parent=1 // pred_check
      _
    $region39: #{tpu_custom_call.1} parent=1 // pred_check_branch
      %90 = sbr.rel (0) target = $region41
    $region40: #{tpu_custom_call.1} parent=1 // pred_region
      %92 = dma.done [#allocation9], 64
    $region41: #{tpu_custom_call.1} parent=1 // pred_fallthru
      _
    %v94 = vld [vmem:[#allocation10] sm:$0x7]
    %v95 = vld [vmem:[#allocation2] sm:$0xff]
    %v96 = vld [vmem:[#allocation2 + $0x8] sm:$0xff]
    %99 = vst [vmem:[#allocation1] ss:$4 sm:$0xff] %v95
    %s100 = scalar_lea.vmem [#allocation1], 32
    %101 = vst [vmem:[%s100] ss:$4 sm:$0xff] %v96
    %v102 = vld.sshfl [vmem:[#allocation1] sm:$0xff pattern:$0x73625140]
    %v103 = vld.sshfl [vmem:[#allocation1 + $0x8] sm:$0xff pattern:$0x73625140]
    %v104 = vld.sshfl [vmem:[#allocation1 + $0x10] sm:$0xff pattern:$0x73625140]
    %v105 = vld.sshfl [vmem:[#allocation1 + $0x18] sm:$0xff pattern:$0x73625140]
    %v106 = vld.sshfl [vmem:[#allocation1 + $0x20] sm:$0xff pattern:$0x73625140]
    %v107 = vld.sshfl [vmem:[#allocation1 + $0x28] sm:$0xff pattern:$0x73625140]
    %v108 = vld.sshfl [vmem:[#allocation1 + $0x30] sm:$0xff pattern:$0x73625140]
    %v109 = vld.sshfl [vmem:[#allocation1 + $0x38] sm:$0xff pattern:$0x73625140]
    %v118 = vpack.c.bf16 %v102, %v102
    %v119 = vpack.c.bf16 %v103, %v103
    %v120 = vpack.c.bf16 %v104, %v104
    %v121 = vpack.c.bf16 %v105, %v105
    %v122 = vpack.c.bf16 %v106, %v106
    %v123 = vpack.c.bf16 %v107, %v107
    %v124 = vpack.c.bf16 %v108, %v108
    %v125 = vpack.c.bf16 %v109, %v109
    %v126 = vld [vmem:[#allocation7] sm:$0xf]
    %v127 = vld [vmem:[#allocation7 + $0x4] sm:$0xf]
    %v128 = vld [vmem:[#allocation7 + $0x8] sm:$0xf]
    %v129 = vld [vmem:[#allocation7 + $0xc] sm:$0xf]
    %v130 = vld [vmem:[#allocation7 + $0x10] sm:$0xf]
    %v131 = vld [vmem:[#allocation7 + $0x14] sm:$0xf]
    %v132 = vld [vmem:[#allocation7 + $0x18] sm:$0xf]
    %v133 = vld [vmem:[#allocation7 + $0x1c] sm:$0xf]
    %v134 = vld [vmem:[#allocation7 + $0x20] sm:$0xf]
    %v135 = vld [vmem:[#allocation7 + $0x24] sm:$0xf]
    %v136 = vld [vmem:[#allocation7 + $0x28] sm:$0xf]
    %v137 = vld [vmem:[#allocation7 + $0x2c] sm:$0xf]
    %v138 = vld [vmem:[#allocation7 + $0x30] sm:$0xf]
    %v139 = vld [vmem:[#allocation7 + $0x34] sm:$0xf]
    %v140 = vld [vmem:[#allocation7 + $0x38] sm:$0xf]
    %v141 = vld [vmem:[#allocation7 + $0x3c] sm:$0xf]
    %v142 = vld [vmem:[#allocation7 + $0x40] sm:$0xf]
    %v143 = vld [vmem:[#allocation7 + $0x44] sm:$0xf]
    %v144 = vld [vmem:[#allocation7 + $0x48] sm:$0xf]
    %v145 = vld [vmem:[#allocation7 + $0x4c] sm:$0xf]
    %v146 = vld [vmem:[#allocation7 + $0x50] sm:$0xf]
    %v147 = vld [vmem:[#allocation7 + $0x54] sm:$0xf]
    %v148 = vld [vmem:[#allocation7 + $0x58] sm:$0xf]
    %v149 = vld [vmem:[#allocation7 + $0x5c] sm:$0xf]
    %v150 = vld [vmem:[#allocation7 + $0x60] sm:$0xf]
    %v151 = vld [vmem:[#allocation7 + $0x64] sm:$0xf]
    %v152 = vld [vmem:[#allocation7 + $0x68] sm:$0xf]
    %v153 = vld [vmem:[#allocation7 + $0x6c] sm:$0xf]
    %v154 = vld [vmem:[#allocation7 + $0x70] sm:$0xf]
    %v155 = vld [vmem:[#allocation7 + $0x74] sm:$0xf]
    %v156 = vld [vmem:[#allocation7 + $0x78] sm:$0xf]
    %v157 = vld [vmem:[#allocation7 + $0x7c] sm:$0xf]
    %v158 = vld [vmem:[#allocation7 + $0x80] sm:$0xf]
    %v159 = vld [vmem:[#allocation7 + $0x84] sm:$0xf]
    %v160 = vld [vmem:[#allocation7 + $0x88] sm:$0xf]
    %v161 = vld [vmem:[#allocation7 + $0x8c] sm:$0xf]
    %v162 = vld [vmem:[#allocation7 + $0x90] sm:$0xf]
    %v163 = vld [vmem:[#allocation7 + $0x94] sm:$0xf]
    %v164 = vld [vmem:[#allocation7 + $0x98] sm:$0xf]
    %v165 = vld [vmem:[#allocation7 + $0x9c] sm:$0xf]
    %v166 = vld [vmem:[#allocation7 + $0xa0] sm:$0xf]
    %v167 = vld [vmem:[#allocation7 + $0xa4] sm:$0xf]
    %v168 = vld [vmem:[#allocation7 + $0xa8] sm:$0xf]
    %v169 = vld [vmem:[#allocation7 + $0xac] sm:$0xf]
    %v170 = vld [vmem:[#allocation7 + $0xb0] sm:$0xf]
    %v171 = vld [vmem:[#allocation7 + $0xb4] sm:$0xf]
    %v172 = vld [vmem:[#allocation7 + $0xb8] sm:$0xf]
    %v173 = vld [vmem:[#allocation7 + $0xbc] sm:$0xf]
    %v174 = vld [vmem:[#allocation7 + $0xc0] sm:$0xf]
    %v175 = vld [vmem:[#allocation7 + $0xc4] sm:$0xf]
    %v176 = vld [vmem:[#allocation7 + $0xc8] sm:$0xf]
    %v177 = vld [vmem:[#allocation7 + $0xcc] sm:$0xf]
    %v178 = vld [vmem:[#allocation7 + $0xd0] sm:$0xf]
    %v179 = vld [vmem:[#allocation7 + $0xd4] sm:$0xf]
    %v180 = vld [vmem:[#allocation7 + $0xd8] sm:$0xf]
    %v181 = vld [vmem:[#allocation7 + $0xdc] sm:$0xf]
    %v182 = vld [vmem:[#allocation7 + $0xe0] sm:$0xf]
    %v183 = vld [vmem:[#allocation7 + $0xe4] sm:$0xf]
    %v184 = vld [vmem:[#allocation7 + $0xe8] sm:$0xf]
    %v185 = vld [vmem:[#allocation7 + $0xec] sm:$0xf]
    %v186 = vld [vmem:[#allocation7 + $0xf0] sm:$0xf]
    %v187 = vld [vmem:[#allocation7 + $0xf4] sm:$0xf]
    %v188 = vld [vmem:[#allocation7 + $0xf8] sm:$0xf]
    %v189 = vld [vmem:[#allocation7 + $0xfc] sm:$0xf]
    %v190 = vld [vmem:[#allocation7 + $0x100] sm:$0xf]
    %v191 = vld [vmem:[#allocation7 + $0x104] sm:$0xf]
    %v192 = vld [vmem:[#allocation7 + $0x108] sm:$0xf]
    %v193 = vld [vmem:[#allocation7 + $0x10c] sm:$0xf]
    %v194 = vld [vmem:[#allocation7 + $0x110] sm:$0xf]
    %v195 = vld [vmem:[#allocation7 + $0x114] sm:$0xf]
    %v196 = vld [vmem:[#allocation7 + $0x118] sm:$0xf]
    %v197 = vld [vmem:[#allocation7 + $0x11c] sm:$0xf]
    %v198 = vld [vmem:[#allocation7 + $0x120] sm:$0xf]
    %v199 = vld [vmem:[#allocation7 + $0x124] sm:$0xf]
    %v200 = vld [vmem:[#allocation7 + $0x128] sm:$0xf]
    %v201 = vld [vmem:[#allocation7 + $0x12c] sm:$0xf]
    %v202 = vld [vmem:[#allocation7 + $0x130] sm:$0xf]
    %v203 = vld [vmem:[#allocation7 + $0x134] sm:$0xf]
    %v204 = vld [vmem:[#allocation7 + $0x138] sm:$0xf]
    %v205 = vld [vmem:[#allocation7 + $0x13c] sm:$0xf]
    %v206 = vld [vmem:[#allocation7 + $0x140] sm:$0xf]
    %v207 = vld [vmem:[#allocation7 + $0x144] sm:$0xf]
    %v208 = vld [vmem:[#allocation7 + $0x148] sm:$0xf]
    %v209 = vld [vmem:[#allocation7 + $0x14c] sm:$0xf]
    %v210 = vld [vmem:[#allocation7 + $0x150] sm:$0xf]
    %v211 = vld [vmem:[#allocation7 + $0x154] sm:$0xf]
    %v212 = vld [vmem:[#allocation7 + $0x158] sm:$0xf]
    %v213 = vld [vmem:[#allocation7 + $0x15c] sm:$0xf]
    %v214 = vld [vmem:[#allocation7 + $0x160] sm:$0xf]
    %v215 = vld [vmem:[#allocation7 + $0x164] sm:$0xf]
    %v216 = vld [vmem:[#allocation7 + $0x168] sm:$0xf]
    %v217 = vld [vmem:[#allocation7 + $0x16c] sm:$0xf]
    %v218 = vld [vmem:[#allocation7 + $0x170] sm:$0xf]
    %v219 = vld [vmem:[#allocation7 + $0x174] sm:$0xf]
    %v220 = vld [vmem:[#allocation7 + $0x178] sm:$0xf]
    %v221 = vld [vmem:[#allocation7 + $0x17c] sm:$0xf]
    %v222 = vld [vmem:[#allocation7 + $0x180] sm:$0xf]
    %v223 = vld [vmem:[#allocation7 + $0x184] sm:$0xf]
    %v224 = vld [vmem:[#allocation7 + $0x188] sm:$0xf]
    %v225 = vld [vmem:[#allocation7 + $0x18c] sm:$0xf]
    %v226 = vld [vmem:[#allocation7 + $0x190] sm:$0xf]
    %v227 = vld [vmem:[#allocation7 + $0x194] sm:$0xf]
    %v228 = vld [vmem:[#allocation7 + $0x198] sm:$0xf]
    %v229 = vld [vmem:[#allocation7 + $0x19c] sm:$0xf]
    %v230 = vld [vmem:[#allocation7 + $0x1a0] sm:$0xf]
    %v231 = vld [vmem:[#allocation7 + $0x1a4] sm:$0xf]
    %v232 = vld [vmem:[#allocation7 + $0x1a8] sm:$0xf]
    %v233 = vld [vmem:[#allocation7 + $0x1ac] sm:$0xf]
    %v234 = vld [vmem:[#allocation7 + $0x1b0] sm:$0xf]
    %v235 = vld [vmem:[#allocation7 + $0x1b4] sm:$0xf]
    %v236 = vld [vmem:[#allocation7 + $0x1b8] sm:$0xf]
    %v237 = vld [vmem:[#allocation7 + $0x1bc] sm:$0xf]
    %v238 = vld [vmem:[#allocation7 + $0x1c0] sm:$0xf]
    %v239 = vld [vmem:[#allocation7 + $0x1c4] sm:$0xf]
    %v240 = vld [vmem:[#allocation7 + $0x1c8] sm:$0xf]
    %v241 = vld [vmem:[#allocation7 + $0x1cc] sm:$0xf]
    %v242 = vld [vmem:[#allocation7 + $0x1d0] sm:$0xf]
    %v243 = vld [vmem:[#allocation7 + $0x1d4] sm:$0xf]
    %v244 = vld [vmem:[#allocation7 + $0x1d8] sm:$0xf]
    %v245 = vld [vmem:[#allocation7 + $0x1dc] sm:$0xf]
    %v246 = vld [vmem:[#allocation7 + $0x1e0] sm:$0xf]
    %v247 = vld [vmem:[#allocation7 + $0x1e4] sm:$0xf]
    %v248 = vld [vmem:[#allocation7 + $0x1e8] sm:$0xf]
    %v249 = vld [vmem:[#allocation7 + $0x1ec] sm:$0xf]
    %v250 = vld [vmem:[#allocation7 + $0x1f0] sm:$0xf]
    %v251 = vld [vmem:[#allocation7 + $0x1f4] sm:$0xf]
    %v252 = vld [vmem:[#allocation7 + $0x1f8] sm:$0xf]
    %v253 = vld [vmem:[#allocation7 + $0x1fc] sm:$0xf]
    %v254 = vld [vmem:[#allocation5] sm:$0xff]
    %v255 = vld [vmem:[#allocation5 + $0x8] sm:$0x3]
    %258 = vst [vmem:[#allocation1] ss:$4 sm:$0xff] %v254
    %s259 = scalar_lea.vmem [#allocation1], 32
    %260 = vst [vmem:[%s259] ss:$4 sm:$0xff] %v255
    %v261 = vld.sshfl [vmem:[#allocation1] sm:$0xff pattern:$0x73625140]
    %v262 = vld.sshfl [vmem:[#allocation1 + $0x8] sm:$0xff pattern:$0x73625140]
    %v263 = vld.sshfl [vmem:[#allocation1 + $0x10] sm:$0xff pattern:$0x73625140]
    %v264 = vld.sshfl [vmem:[#allocation1 + $0x18] sm:$0xff pattern:$0x73625140]
    %v265 = vld.sshfl [vmem:[#allocation1 + $0x20] sm:$0xff pattern:$0x73625140]
    %v271 = vpack.c.bf16 %v261, %v261
    %v272 = vpack.c.bf16 %v262, %v262
    %v273 = vpack.c.bf16 %v263, %v263
    %v274 = vpack.c.bf16 %v264, %v264
    %v275 = vpack.c.bf16 %v265, %v265
    %v276 = vld [vmem:[#allocation7 + $0x200] sm:$0xf]
    %v277 = vld [vmem:[#allocation7 + $0x204] sm:$0xf]
    %v278 = vld [vmem:[#allocation7 + $0x208] sm:$0xf]
    %v279 = vld [vmem:[#allocation7 + $0x20c] sm:$0xf]
    %v280 = vld [vmem:[#allocation7 + $0x210] sm:$0xf]
    %v281 = vld [vmem:[#allocation7 + $0x214] sm:$0xf]
    %v282 = vld [vmem:[#allocation7 + $0x218] sm:$0xf]
    %v283 = vld [vmem:[#allocation7 + $0x21c] sm:$0xf]
    %v284 = vld [vmem:[#allocation7 + $0x220] sm:$0xf]
    %v285 = vld [vmem:[#allocation7 + $0x224] sm:$0xf]
    %v286 = vld [vmem:[#allocation7 + $0x228] sm:$0xf]
    %v287 = vld [vmem:[#allocation7 + $0x22c] sm:$0xf]
    %v288 = vld [vmem:[#allocation7 + $0x230] sm:$0xf]
    %v289 = vld [vmem:[#allocation7 + $0x234] sm:$0xf]
    %v290 = vld [vmem:[#allocation7 + $0x238] sm:$0xf]
    %v291 = vld [vmem:[#allocation7 + $0x23c] sm:$0xf]
    %v292 = vld [vmem:[#allocation7 + $0x240] sm:$0xf]
    %v293 = vld [vmem:[#allocation7 + $0x244] sm:$0xf]
    %v294 = vld [vmem:[#allocation7 + $0x248] sm:$0xf]
    %v295 = vld [vmem:[#allocation7 + $0x24c] sm:$0xf]
    %v296 = vld [vmem:[#allocation7 + $0x250] sm:$0xf]
    %v297 = vld [vmem:[#allocation7 + $0x254] sm:$0xf]
    %v298 = vld [vmem:[#allocation7 + $0x258] sm:$0xf]
    %v299 = vld [vmem:[#allocation7 + $0x25c] sm:$0xf]
    %v300 = vld [vmem:[#allocation7 + $0x260] sm:$0xf]
    %v301 = vld [vmem:[#allocation7 + $0x264] sm:$0xf]
    %v302 = vld [vmem:[#allocation7 + $0x268] sm:$0xf]
    %v303 = vld [vmem:[#allocation7 + $0x26c] sm:$0xf]
    %v304 = vld [vmem:[#allocation7 + $0x270] sm:$0xf]
    %v305 = vld [vmem:[#allocation7 + $0x274] sm:$0xf]
    %v306 = vld [vmem:[#allocation7 + $0x278] sm:$0xf]
    %v307 = vld [vmem:[#allocation7 + $0x27c] sm:$0xf]
    %v308 = vld [vmem:[#allocation7 + $0x280] sm:$0xf]
    %v309 = vld [vmem:[#allocation7 + $0x284] sm:$0xf]
    %v310 = vld [vmem:[#allocation7 + $0x288] sm:$0xf]
    %v311 = vld [vmem:[#allocation7 + $0x28c] sm:$0xf]
    %v312 = vld [vmem:[#allocation7 + $0x290] sm:$0xf]
    %v313 = vld [vmem:[#allocation7 + $0x294] sm:$0xf]
    %v314 = vld [vmem:[#allocation7 + $0x298] sm:$0xf]
    %v315 = vld [vmem:[#allocation7 + $0x29c] sm:$0xf]
    %v316 = vld [vmem:[#allocation7 + $0x2a0] sm:$0xf]
    %v317 = vld [vmem:[#allocation7 + $0x2a4] sm:$0xf]
    %v318 = vld [vmem:[#allocation7 + $0x2a8] sm:$0xf]
    %v319 = vld [vmem:[#allocation7 + $0x2ac] sm:$0xf]
    %v320 = vld [vmem:[#allocation7 + $0x2b0] sm:$0xf]
    %v321 = vld [vmem:[#allocation7 + $0x2b4] sm:$0xf]
    %v322 = vld [vmem:[#allocation7 + $0x2b8] sm:$0xf]
    %v323 = vld [vmem:[#allocation7 + $0x2bc] sm:$0xf]
    %v324 = vld [vmem:[#allocation7 + $0x2c0] sm:$0xf]
    %v325 = vld [vmem:[#allocation7 + $0x2c4] sm:$0xf]
    %v326 = vld [vmem:[#allocation7 + $0x2c8] sm:$0xf]
    %v327 = vld [vmem:[#allocation7 + $0x2cc] sm:$0xf]
    %v328 = vld [vmem:[#allocation7 + $0x2d0] sm:$0xf]
    %v329 = vld [vmem:[#allocation7 + $0x2d4] sm:$0xf]
    %v330 = vld [vmem:[#allocation7 + $0x2d8] sm:$0xf]
    %v331 = vld [vmem:[#allocation7 + $0x2dc] sm:$0xf]
    %v332 = vld [vmem:[#allocation7 + $0x2e0] sm:$0xf]
    %v333 = vld [vmem:[#allocation7 + $0x2e4] sm:$0xf]
    %v334 = vld [vmem:[#allocation7 + $0x2e8] sm:$0xf]
    %v335 = vld [vmem:[#allocation7 + $0x2ec] sm:$0xf]
    %v336 = vld [vmem:[#allocation7 + $0x2f0] sm:$0xf]
    %v337 = vld [vmem:[#allocation7 + $0x2f4] sm:$0xf]
    %v338 = vld [vmem:[#allocation7 + $0x2f8] sm:$0xf]
    %v339 = vld [vmem:[#allocation7 + $0x2fc] sm:$0xf]
    %v340 = vld [vmem:[#allocation7 + $0x300] sm:$0xf]
    %v341 = vld [vmem:[#allocation7 + $0x304] sm:$0xf]
    %v342 = vld [vmem:[#allocation7 + $0x308] sm:$0xf]
    %v343 = vld [vmem:[#allocation7 + $0x30c] sm:$0xf]
    %v412 = vunpack.c.l.b16 %v276
    %v413 = vunpack.c.l.b16 %v277
    %v414 = vunpack.c.l.b16 %v278
    %v415 = vunpack.c.l.b16 %v279
    %v416 = vunpack.c.l.b16 %v280
    %v417 = vunpack.c.l.b16 %v281
    %v418 = vunpack.c.l.b16 %v282
    %v419 = vunpack.c.l.b16 %v283
    %v420 = vunpack.c.l.b16 %v284
    %v421 = vunpack.c.l.b16 %v285
    %v422 = vunpack.c.l.b16 %v286
    %v423 = vunpack.c.l.b16 %v287
    %v424 = vunpack.c.l.b16 %v288
    %v425 = vunpack.c.l.b16 %v289
    %v426 = vunpack.c.l.b16 %v290
    %v427 = vunpack.c.l.b16 %v291
    %v428 = vunpack.c.l.b16 %v292
    %v429 = vunpack.c.l.b16 %v293
    %v430 = vunpack.c.l.b16 %v294
    %v431 = vunpack.c.l.b16 %v295
    %v432 = vunpack.c.l.b16 %v296
    %v433 = vunpack.c.l.b16 %v297
    %v434 = vunpack.c.l.b16 %v298
    %v435 = vunpack.c.l.b16 %v299
    %v436 = vunpack.c.l.b16 %v300
    %v437 = vunpack.c.l.b16 %v301
    %v438 = vunpack.c.l.b16 %v302
    %v439 = vunpack.c.l.b16 %v303
    %v440 = vunpack.c.l.b16 %v304
    %v441 = vunpack.c.l.b16 %v305
    %v442 = vunpack.c.l.b16 %v306
    %v443 = vunpack.c.l.b16 %v307
    %v444 = vunpack.c.l.b16 %v308
    %v445 = vunpack.c.l.b16 %v309
    %v446 = vunpack.c.l.b16 %v310
    %v447 = vunpack.c.l.b16 %v311
    %v448 = vunpack.c.l.b16 %v312
    %v449 = vunpack.c.l.b16 %v313
    %v450 = vunpack.c.l.b16 %v314
    %v451 = vunpack.c.l.b16 %v315
    %v452 = vunpack.c.l.b16 %v316
    %v453 = vunpack.c.l.b16 %v317
    %v454 = vunpack.c.l.b16 %v318
    %v455 = vunpack.c.l.b16 %v319
    %v456 = vunpack.c.l.b16 %v320
    %v457 = vunpack.c.l.b16 %v321
    %v458 = vunpack.c.l.b16 %v322
    %v459 = vunpack.c.l.b16 %v323
    %v460 = vunpack.c.l.b16 %v324
    %v461 = vunpack.c.l.b16 %v325
    %v462 = vunpack.c.l.b16 %v326
    %v463 = vunpack.c.l.b16 %v327
    %v464 = vunpack.c.l.b16 %v328
    %v465 = vunpack.c.l.b16 %v329
    %v466 = vunpack.c.l.b16 %v330
    %v467 = vunpack.c.l.b16 %v331
    %v468 = vunpack.c.l.b16 %v332
    %v469 = vunpack.c.l.b16 %v333
    %v470 = vunpack.c.l.b16 %v334
    %v471 = vunpack.c.l.b16 %v335
    %v472 = vunpack.c.l.b16 %v336
    %v473 = vunpack.c.l.b16 %v337
    %v474 = vunpack.c.l.b16 %v338
    %v475 = vunpack.c.l.b16 %v339
    %v476 = vunpack.c.l.b16 %v340
    %v477 = vunpack.c.l.b16 %v341
    %v478 = vunpack.c.l.b16 %v342
    %v479 = vunpack.c.l.b16 %v343
    %v480 = vpack.c.b16 %v413, %v412
    %v481 = vpack.c.b16 %v415, %v414
    %v482 = vpack.c.b16 %v417, %v416
    %v483 = vpack.c.b16 %v419, %v418
    %v484 = vpack.c.b16 %v421, %v420
    %v485 = vpack.c.b16 %v423, %v422
    %v486 = vpack.c.b16 %v425, %v424
    %v487 = vpack.c.b16 %v427, %v426
    %v488 = vpack.c.b16 %v429, %v428
    %v489 = vpack.c.b16 %v431, %v430
    %v490 = vpack.c.b16 %v433, %v432
    %v491 = vpack.c.b16 %v435, %v434
    %v492 = vpack.c.b16 %v437, %v436
    %v493 = vpack.c.b16 %v439, %v438
    %v494 = vpack.c.b16 %v441, %v440
    %v495 = vpack.c.b16 %v443, %v442
    %v496 = vpack.c.b16 %v445, %v444
    %v497 = vpack.c.b16 %v447, %v446
    %v498 = vpack.c.b16 %v449, %v448
    %v499 = vpack.c.b16 %v451, %v450
    %v500 = vpack.c.b16 %v453, %v452
    %v501 = vpack.c.b16 %v455, %v454
    %v502 = vpack.c.b16 %v457, %v456
    %v503 = vpack.c.b16 %v459, %v458
    %v504 = vpack.c.b16 %v461, %v460
    %v505 = vpack.c.b16 %v463, %v462
    %v506 = vpack.c.b16 %v465, %v464
    %v507 = vpack.c.b16 %v467, %v466
    %v508 = vpack.c.b16 %v469, %v468
    %v509 = vpack.c.b16 %v471, %v470
    %v510 = vpack.c.b16 %v473, %v472
    %v511 = vpack.c.b16 %v475, %v474
    %v512 = vpack.c.b16 %v477, %v476
    %v513 = vpack.c.b16 %v479, %v478
    %vm548 = vcmask 261120
    %v550 = vsel %vm548, %v275, 0
    %552 = vmatpush.bf16.msra.mxu0 %v487
    %553 = vmatpush.bf16.msra.mxu0 %v486
    %554 = vmatpush.bf16.msra.mxu0 %v485
    %555 = vmatpush.bf16.msra.mxu0 %v484
    %556 = vmatpush.bf16.msra.mxu0 %v483
    %557 = vmatpush.bf16.msra.mxu0 %v482
    %558 = vmatpush.bf16.msra.mxu0 %v481
    %559 = vmatpush.bf16.msra.mxu0 %v480
    %560 = vmatmul.bf16.gmra.mxu0 %v271
    %v561 = vpop.f32.mrf.mxu0
    %v562 = vadd.f32 0.0, %v561
    %v563 = vpop.f32.mrf.mxu0
    %564 = vdwg.mxu0
    %565 = vmatpush.bf16.msra.mxu0 %v495
    %566 = vmatpush.bf16.msra.mxu0 %v494
    %567 = vmatpush.bf16.msra.mxu0 %v493
    %568 = vmatpush.bf16.msra.mxu0 %v492
    %569 = vmatpush.bf16.msra.mxu0 %v491
    %570 = vmatpush.bf16.msra.mxu0 %v490
    %571 = vmatpush.bf16.msra.mxu0 %v489
    %572 = vmatpush.bf16.msra.mxu0 %v488
    %573 = vmatmul.bf16.gmra.mxu0 %v272
    %v574 = vpop.f32.mrf.mxu0
    %v575 = vadd.f32 %v562, %v574
    %v576 = vpop.f32.mrf.mxu0
    %577 = vdwg.mxu0
    %578 = vmatpush.bf16.msra.mxu0 %v503
    %579 = vmatpush.bf16.msra.mxu0 %v502
    %580 = vmatpush.bf16.msra.mxu0 %v501
    %581 = vmatpush.bf16.msra.mxu0 %v500
    %582 = vmatpush.bf16.msra.mxu0 %v499
    %583 = vmatpush.bf16.msra.mxu0 %v498
    %584 = vmatpush.bf16.msra.mxu0 %v497
    %585 = vmatpush.bf16.msra.mxu0 %v496
    %586 = vmatmul.bf16.gmra.mxu0 %v273
    %v587 = vpop.f32.mrf.mxu0
    %v588 = vadd.f32 %v575, %v587
    %v589 = vpop.f32.mrf.mxu0
    %590 = vdwg.mxu0
    %591 = vmatpush.bf16.msra.mxu0 %v511
    %592 = vmatpush.bf16.msra.mxu0 %v510
    %593 = vmatpush.bf16.msra.mxu0 %v509
    %594 = vmatpush.bf16.msra.mxu0 %v508
    %595 = vmatpush.bf16.msra.mxu0 %v507
    %596 = vmatpush.bf16.msra.mxu0 %v506
    %597 = vmatpush.bf16.msra.mxu0 %v505
    %598 = vmatpush.bf16.msra.mxu0 %v504
    %599 = vmatmul.bf16.gmra.mxu0 %v274
    %v600 = vpop.f32.mrf.mxu0
    %v601 = vadd.f32 %v588, %v600
    %v602 = vpop.f32.mrf.mxu0
    %603 = vdwg.mxu0
    %604 = vmatpush.bf16.msra.mxu0 0
    %605 = vmatpush.bf16.msra.mxu0 0
    %606 = vmatpush.bf16.msra.mxu0 0
    %607 = vmatpush.bf16.msra.mxu0 0
    %608 = vmatpush.bf16.msra.mxu0 0
    %609 = vmatpush.bf16.msra.mxu0 0
    %610 = vmatpush.bf16.msra.mxu0 %v513
    %611 = vmatpush.bf16.msra.mxu0 %v512
    %612 = vmatmul.bf16.gmra.mxu0 %v550
    %v613 = vpop.f32.mrf.mxu0
    %v614 = vadd.f32 %v601, %v613
    %v615 = vpop.f32.mrf.mxu0
    %616 = vdwg.mxu0
    %v745 = vunpack.c.l.b16 %v126
    %v746 = vunpack.c.l.b16 %v127
    %v747 = vunpack.c.l.b16 %v128
    %v748 = vunpack.c.l.b16 %v129
    %v749 = vunpack.c.l.b16 %v130
    %v750 = vunpack.c.l.b16 %v131
    %v751 = vunpack.c.l.b16 %v132
    %v752 = vunpack.c.l.b16 %v133
    %v753 = vunpack.c.l.b16 %v134
    %v754 = vunpack.c.l.b16 %v135
    %v755 = vunpack.c.l.b16 %v136
    %v756 = vunpack.c.l.b16 %v137
    %v757 = vunpack.c.l.b16 %v138
    %v758 = vunpack.c.l.b16 %v139
    %v759 = vunpack.c.l.b16 %v140
    %v760 = vunpack.c.l.b16 %v141
    %v761 = vunpack.c.l.b16 %v142
    %v762 = vunpack.c.l.b16 %v143
    %v763 = vunpack.c.l.b16 %v144
    %v764 = vunpack.c.l.b16 %v145
    %v765 = vunpack.c.l.b16 %v146
    %v766 = vunpack.c.l.b16 %v147
    %v767 = vunpack.c.l.b16 %v148
    %v768 = vunpack.c.l.b16 %v149
    %v769 = vunpack.c.l.b16 %v150
    %v770 = vunpack.c.l.b16 %v151
    %v771 = vunpack.c.l.b16 %v152
    %v772 = vunpack.c.l.b16 %v153
    %v773 = vunpack.c.l.b16 %v154
    %v774 = vunpack.c.l.b16 %v155
    %v775 = vunpack.c.l.b16 %v156
    %v776 = vunpack.c.l.b16 %v157
    %v777 = vunpack.c.l.b16 %v158
    %v778 = vunpack.c.l.b16 %v159
    %v779 = vunpack.c.l.b16 %v160
    %v780 = vunpack.c.l.b16 %v161
    %v781 = vunpack.c.l.b16 %v162
    %v782 = vunpack.c.l.b16 %v163
    %v783 = vunpack.c.l.b16 %v164
    %v784 = vunpack.c.l.b16 %v165
    %v785 = vunpack.c.l.b16 %v166
    %v786 = vunpack.c.l.b16 %v167
    %v787 = vunpack.c.l.b16 %v168
    %v788 = vunpack.c.l.b16 %v169
    %v789 = vunpack.c.l.b16 %v170
    %v790 = vunpack.c.l.b16 %v171
    %v791 = vunpack.c.l.b16 %v172
    %v792 = vunpack.c.l.b16 %v173
    %v793 = vunpack.c.l.b16 %v174
    %v794 = vunpack.c.l.b16 %v175
    %v795 = vunpack.c.l.b16 %v176
    %v796 = vunpack.c.l.b16 %v177
    %v797 = vunpack.c.l.b16 %v178
    %v798 = vunpack.c.l.b16 %v179
    %v799 = vunpack.c.l.b16 %v180
    %v800 = vunpack.c.l.b16 %v181
    %v801 = vunpack.c.l.b16 %v182
    %v802 = vunpack.c.l.b16 %v183
    %v803 = vunpack.c.l.b16 %v184
    %v804 = vunpack.c.l.b16 %v185
    %v805 = vunpack.c.l.b16 %v186
    %v806 = vunpack.c.l.b16 %v187
    %v807 = vunpack.c.l.b16 %v188
    %v808 = vunpack.c.l.b16 %v189
    %v809 = vunpack.c.l.b16 %v190
    %v810 = vunpack.c.l.b16 %v191
    %v811 = vunpack.c.l.b16 %v192
    %v812 = vunpack.c.l.b16 %v193
    %v813 = vunpack.c.l.b16 %v194
    %v814 = vunpack.c.l.b16 %v195
    %v815 = vunpack.c.l.b16 %v196
    %v816 = vunpack.c.l.b16 %v197
    %v817 = vunpack.c.l.b16 %v198
    %v818 = vunpack.c.l.b16 %v199
    %v819 = vunpack.c.l.b16 %v200
    %v820 = vunpack.c.l.b16 %v201
    %v821 = vunpack.c.l.b16 %v202
    %v822 = vunpack.c.l.b16 %v203
    %v823 = vunpack.c.l.b16 %v204
    %v824 = vunpack.c.l.b16 %v205
    %v825 = vunpack.c.l.b16 %v206
    %v826 = vunpack.c.l.b16 %v207
    %v827 = vunpack.c.l.b16 %v208
    %v828 = vunpack.c.l.b16 %v209
    %v829 = vunpack.c.l.b16 %v210
    %v830 = vunpack.c.l.b16 %v211
    %v831 = vunpack.c.l.b16 %v212
    %v832 = vunpack.c.l.b16 %v213
    %v833 = vunpack.c.l.b16 %v214
    %v834 = vunpack.c.l.b16 %v215
    %v835 = vunpack.c.l.b16 %v216
    %v836 = vunpack.c.l.b16 %v217
    %v837 = vunpack.c.l.b16 %v218
    %v838 = vunpack.c.l.b16 %v219
    %v839 = vunpack.c.l.b16 %v220
    %v840 = vunpack.c.l.b16 %v221
    %v841 = vunpack.c.l.b16 %v222
    %v842 = vunpack.c.l.b16 %v223
    %v843 = vunpack.c.l.b16 %v224
    %v844 = vunpack.c.l.b16 %v225
    %v845 = vunpack.c.l.b16 %v226
    %v846 = vunpack.c.l.b16 %v227
    %v847 = vunpack.c.l.b16 %v228
    %v848 = vunpack.c.l.b16 %v229
    %v849 = vunpack.c.l.b16 %v230
    %v850 = vunpack.c.l.b16 %v231
    %v851 = vunpack.c.l.b16 %v232
    %v852 = vunpack.c.l.b16 %v233
    %v853 = vunpack.c.l.b16 %v234
    %v854 = vunpack.c.l.b16 %v235
    %v855 = vunpack.c.l.b16 %v236
    %v856 = vunpack.c.l.b16 %v237
    %v857 = vunpack.c.l.b16 %v238
    %v858 = vunpack.c.l.b16 %v239
    %v859 = vunpack.c.l.b16 %v240
    %v860 = vunpack.c.l.b16 %v241
    %v861 = vunpack.c.l.b16 %v242
    %v862 = vunpack.c.l.b16 %v243
    %v863 = vunpack.c.l.b16 %v244
    %v864 = vunpack.c.l.b16 %v245
    %v865 = vunpack.c.l.b16 %v246
    %v866 = vunpack.c.l.b16 %v247
    %v867 = vunpack.c.l.b16 %v248
    %v868 = vunpack.c.l.b16 %v249
    %v869 = vunpack.c.l.b16 %v250
    %v870 = vunpack.c.l.b16 %v251
    %v871 = vunpack.c.l.b16 %v252
    %v872 = vunpack.c.l.b16 %v253
    %v873 = vpack.c.b16 %v746, %v745
    %v874 = vpack.c.b16 %v748, %v747
    %v875 = vpack.c.b16 %v750, %v749
    %v876 = vpack.c.b16 %v752, %v751
    %v877 = vpack.c.b16 %v754, %v753
    %v878 = vpack.c.b16 %v756, %v755
    %v879 = vpack.c.b16 %v758, %v757
    %v880 = vpack.c.b16 %v760, %v759
    %v881 = vpack.c.b16 %v762, %v761
    %v882 = vpack.c.b16 %v764, %v763
    %v883 = vpack.c.b16 %v766, %v765
    %v884 = vpack.c.b16 %v768, %v767
    %v885 = vpack.c.b16 %v770, %v769
    %v886 = vpack.c.b16 %v772, %v771
    %v887 = vpack.c.b16 %v774, %v773
    %v888 = vpack.c.b16 %v776, %v775
    %v889 = vpack.c.b16 %v778, %v777
    %v890 = vpack.c.b16 %v780, %v779
    %v891 = vpack.c.b16 %v782, %v781
    %v892 = vpack.c.b16 %v784, %v783
    %v893 = vpack.c.b16 %v786, %v785
    %v894 = vpack.c.b16 %v788, %v787
    %v895 = vpack.c.b16 %v790, %v789
    %v896 = vpack.c.b16 %v792, %v791
    %v897 = vpack.c.b16 %v794, %v793
    %v898 = vpack.c.b16 %v796, %v795
    %v899 = vpack.c.b16 %v798, %v797
    %v900 = vpack.c.b16 %v800, %v799
    %v901 = vpack.c.b16 %v802, %v801
    %v902 = vpack.c.b16 %v804, %v803
    %v903 = vpack.c.b16 %v806, %v805
    %v904 = vpack.c.b16 %v808, %v807
    %v905 = vpack.c.b16 %v810, %v809
    %v906 = vpack.c.b16 %v812, %v811
    %v907 = vpack.c.b16 %v814, %v813
    %v908 = vpack.c.b16 %v816, %v815
    %v909 = vpack.c.b16 %v818, %v817
    %v910 = vpack.c.b16 %v820, %v819
    %v911 = vpack.c.b16 %v822, %v821
    %v912 = vpack.c.b16 %v824, %v823
    %v913 = vpack.c.b16 %v826, %v825
    %v914 = vpack.c.b16 %v828, %v827
    %v915 = vpack.c.b16 %v830, %v829
    %v916 = vpack.c.b16 %v832, %v831
    %v917 = vpack.c.b16 %v834, %v833
    %v918 = vpack.c.b16 %v836, %v835
    %v919 = vpack.c.b16 %v838, %v837
    %v920 = vpack.c.b16 %v840, %v839
    %v921 = vpack.c.b16 %v842, %v841
    %v922 = vpack.c.b16 %v844, %v843
    %v923 = vpack.c.b16 %v846, %v845
    %v924 = vpack.c.b16 %v848, %v847
    %v925 = vpack.c.b16 %v850, %v849
    %v926 = vpack.c.b16 %v852, %v851
    %v927 = vpack.c.b16 %v854, %v853
    %v928 = vpack.c.b16 %v856, %v855
    %v929 = vpack.c.b16 %v858, %v857
    %v930 = vpack.c.b16 %v860, %v859
    %v931 = vpack.c.b16 %v862, %v861
    %v932 = vpack.c.b16 %v864, %v863
    %v933 = vpack.c.b16 %v866, %v865
    %v934 = vpack.c.b16 %v868, %v867
    %v935 = vpack.c.b16 %v870, %v869
    %v936 = vpack.c.b16 %v872, %v871
    %1001 = vmatpush.bf16.msra.mxu0 %v880
    %1002 = vmatpush.bf16.msra.mxu0 %v879
    %1003 = vmatpush.bf16.msra.mxu0 %v878
    %1004 = vmatpush.bf16.msra.mxu0 %v877
    %1005 = vmatpush.bf16.msra.mxu0 %v876
    %1006 = vmatpush.bf16.msra.mxu0 %v875
    %1007 = vmatpush.bf16.msra.mxu0 %v874
    %1008 = vmatpush.bf16.msra.mxu0 %v873
    %1009 = vmatmul.bf16.gmra.mxu0 %v118
    %v1010 = vpop.f32.mrf.mxu0
    %v1011 = vadd.f32 %v614, %v1010
    %v1012 = vpop.f32.mrf.mxu0
    %1013 = vdwg.mxu0
    %1014 = vmatpush.bf16.msra.mxu0 %v888
    %1015 = vmatpush.bf16.msra.mxu0 %v887
    %1016 = vmatpush.bf16.msra.mxu0 %v886
    %1017 = vmatpush.bf16.msra.mxu0 %v885
    %1018 = vmatpush.bf16.msra.mxu0 %v884
    %1019 = vmatpush.bf16.msra.mxu0 %v883
    %1020 = vmatpush.bf16.msra.mxu0 %v882
    %1021 = vmatpush.bf16.msra.mxu0 %v881
    %1022 = vmatmul.bf16.gmra.mxu0 %v119
    %v1023 = vpop.f32.mrf.mxu0
    %v1024 = vadd.f32 %v1011, %v1023
    %v1025 = vpop.f32.mrf.mxu0
    %1026 = vdwg.mxu0
    %1027 = vmatpush.bf16.msra.mxu0 %v896
    %1028 = vmatpush.bf16.msra.mxu0 %v895
    %1029 = vmatpush.bf16.msra.mxu0 %v894
    %1030 = vmatpush.bf16.msra.mxu0 %v893
    %1031 = vmatpush.bf16.msra.mxu0 %v892
    %1032 = vmatpush.bf16.msra.mxu0 %v891
    %1033 = vmatpush.bf16.msra.mxu0 %v890
    %1034 = vmatpush.bf16.msra.mxu0 %v889
    %1035 = vmatmul.bf16.gmra.mxu0 %v120
    %v1036 = vpop.f32.mrf.mxu0
    %v1037 = vadd.f32 %v1024, %v1036
    %v1038 = vpop.f32.mrf.mxu0
    %1039 = vdwg.mxu0
    %1040 = vmatpush.bf16.msra.mxu0 %v904
    %1041 = vmatpush.bf16.msra.mxu0 %v903
    %1042 = vmatpush.bf16.msra.mxu0 %v902
    %1043 = vmatpush.bf16.msra.mxu0 %v901
    %1044 = vmatpush.bf16.msra.mxu0 %v900
    %1045 = vmatpush.bf16.msra.mxu0 %v899
    %1046 = vmatpush.bf16.msra.mxu0 %v898
    %1047 = vmatpush.bf16.msra.mxu0 %v897
    %1048 = vmatmul.bf16.gmra.mxu0 %v121
    %v1049 = vpop.f32.mrf.mxu0
    %v1050 = vadd.f32 %v1037, %v1049
    %v1051 = vpop.f32.mrf.mxu0
    %1052 = vdwg.mxu0
    %1053 = vmatpush.bf16.msra.mxu0 %v912
    %1054 = vmatpush.bf16.msra.mxu0 %v911
    %1055 = vmatpush.bf16.msra.mxu0 %v910
    %1056 = vmatpush.bf16.msra.mxu0 %v909
    %1057 = vmatpush.bf16.msra.mxu0 %v908
    %1058 = vmatpush.bf16.msra.mxu0 %v907
    %1059 = vmatpush.bf16.msra.mxu0 %v906
    %1060 = vmatpush.bf16.msra.mxu0 %v905
    %1061 = vmatmul.bf16.gmra.mxu0 %v122
    %v1062 = vpop.f32.mrf.mxu0
    %v1063 = vadd.f32 %v1050, %v1062
    %v1064 = vpop.f32.mrf.mxu0
    %1065 = vdwg.mxu0
    %1066 = vmatpush.bf16.msra.mxu0 %v920
    %1067 = vmatpush.bf16.msra.mxu0 %v919
    %1068 = vmatpush.bf16.msra.mxu0 %v918
    %1069 = vmatpush.bf16.msra.mxu0 %v917
    %1070 = vmatpush.bf16.msra.mxu0 %v916
    %1071 = vmatpush.bf16.msra.mxu0 %v915
    %1072 = vmatpush.bf16.msra.mxu0 %v914
    %1073 = vmatpush.bf16.msra.mxu0 %v913
    %1074 = vmatmul.bf16.gmra.mxu0 %v123
    %v1075 = vpop.f32.mrf.mxu0
    %v1076 = vadd.f32 %v1063, %v1075
    %v1077 = vpop.f32.mrf.mxu0
    %1078 = vdwg.mxu0
    %1079 = vmatpush.bf16.msra.mxu0 %v928
    %1080 = vmatpush.bf16.msra.mxu0 %v927
    %1081 = vmatpush.bf16.msra.mxu0 %v926
    %1082 = vmatpush.bf16.msra.mxu0 %v925
    %1083 = vmatpush.bf16.msra.mxu0 %v924
    %1084 = vmatpush.bf16.msra.mxu0 %v923
    %1085 = vmatpush.bf16.msra.mxu0 %v922
    %1086 = vmatpush.bf16.msra.mxu0 %v921
    %1087 = vmatmul.bf16.gmra.mxu0 %v124
    %v1088 = vpop.f32.mrf.mxu0
    %v1089 = vadd.f32 %v1076, %v1088
    %v1090 = vpop.f32.mrf.mxu0
    %1091 = vdwg.mxu0
    %1092 = vmatpush.bf16.msra.mxu0 %v936
    %1093 = vmatpush.bf16.msra.mxu0 %v935
    %1094 = vmatpush.bf16.msra.mxu0 %v934
    %1095 = vmatpush.bf16.msra.mxu0 %v933
    %1096 = vmatpush.bf16.msra.mxu0 %v932
    %1097 = vmatpush.bf16.msra.mxu0 %v931
    %1098 = vmatpush.bf16.msra.mxu0 %v930
    %1099 = vmatpush.bf16.msra.mxu0 %v929
    %1100 = vmatmul.bf16.gmra.mxu0 %v125
    %v1101 = vpop.f32.mrf.mxu0
    %v1102 = vadd.f32 %v1089, %v1101
    %v1103 = vpop.f32.mrf.mxu0
    %1104 = vdwg.mxu0
    %v1105 = vperm.slane %v94, 0
    %v1106 = vadd.f32 %v1102, %v1105
    %v1107 = vmax.f32 %v1106, 0.0
    %v1108 = vld [vmem:[#allocation8] sm:$0xf]
    %v1109 = vld [vmem:[#allocation8 + $0x4] sm:$0xf]
    %v1110 = vld [vmem:[#allocation8 + $0x8] sm:$0xf]
    %v1111 = vld [vmem:[#allocation8 + $0xc] sm:$0xf]
    %v1112 = vld [vmem:[#allocation8 + $0x10] sm:$0xf]
    %v1113 = vld [vmem:[#allocation8 + $0x14] sm:$0xf]
    %v1114 = vld [vmem:[#allocation8 + $0x18] sm:$0xf]
    %v1115 = vld [vmem:[#allocation8 + $0x1c] sm:$0xf]
    %v1116 = vld [vmem:[#allocation8 + $0x20] sm:$0xf]
    %v1117 = vld [vmem:[#allocation8 + $0x24] sm:$0xf]
    %v1118 = vld [vmem:[#allocation8 + $0x28] sm:$0xf]
    %v1119 = vld [vmem:[#allocation8 + $0x2c] sm:$0xf]
    %v1120 = vld [vmem:[#allocation8 + $0x30] sm:$0xf]
    %v1121 = vld [vmem:[#allocation8 + $0x34] sm:$0xf]
    %v1122 = vld [vmem:[#allocation8 + $0x38] sm:$0xf]
    %v1123 = vld [vmem:[#allocation8 + $0x3c] sm:$0xf]
    %v1124 = vpack.c.bf16 %v1107, %v1107
    %v1125 = vperm.slane %v94, 1
    %v1142 = vunpack.c.l.b16 %v1108
    %v1143 = vunpack.c.l.b16 %v1109
    %v1144 = vunpack.c.l.b16 %v1110
    %v1145 = vunpack.c.l.b16 %v1111
    %v1146 = vunpack.c.l.b16 %v1112
    %v1147 = vunpack.c.l.b16 %v1113
    %v1148 = vunpack.c.l.b16 %v1114
    %v1149 = vunpack.c.l.b16 %v1115
    %v1150 = vunpack.c.l.b16 %v1116
    %v1151 = vunpack.c.l.b16 %v1117
    %v1152 = vunpack.c.l.b16 %v1118
    %v1153 = vunpack.c.l.b16 %v1119
    %v1154 = vunpack.c.l.b16 %v1120
    %v1155 = vunpack.c.l.b16 %v1121
    %v1156 = vunpack.c.l.b16 %v1122
    %v1157 = vunpack.c.l.b16 %v1123
    %v1158 = vpack.c.b16 %v1143, %v1142
    %v1159 = vpack.c.b16 %v1145, %v1144
    %v1160 = vpack.c.b16 %v1147, %v1146
    %v1161 = vpack.c.b16 %v1149, %v1148
    %v1162 = vpack.c.b16 %v1151, %v1150
    %v1163 = vpack.c.b16 %v1153, %v1152
    %v1164 = vpack.c.b16 %v1155, %v1154
    %v1165 = vpack.c.b16 %v1157, %v1156
    %1174 = vmatpush.bf16.msra.mxu0 %v1165
    %1175 = vmatpush.bf16.msra.mxu0 %v1164
    %1176 = vmatpush.bf16.msra.mxu0 %v1163
    %1177 = vmatpush.bf16.msra.mxu0 %v1162
    %1178 = vmatpush.bf16.msra.mxu0 %v1161
    %1179 = vmatpush.bf16.msra.mxu0 %v1160
    %1180 = vmatpush.bf16.msra.mxu0 %v1159
    %1181 = vmatpush.bf16.msra.mxu0 %v1158
    %1182 = vmatmul.bf16.gmra.mxu0 %v1124
    %v1183 = vpop.f32.mrf.mxu0
    %v1184 = vadd.f32 %v1125, %v1183
    %v1185 = vpop.f32.mrf.mxu0
    %1186 = vdwg.mxu0
    %v1187 = vmax.f32 %v1184, 0.0
    %s1188 = scalar_lea.vmem [#allocation8], 64
    %v1189 = vld [vmem:[%s1188] sm:$0xf]
    %v1190 = vld [vmem:[%s1188 + $0x4] sm:$0xf]
    %v1191 = vld [vmem:[%s1188 + $0x8] sm:$0xf]
    %v1192 = vld [vmem:[%s1188 + $0xc] sm:$0xf]
    %v1193 = vld [vmem:[%s1188 + $0x10] sm:$0xf]
    %v1194 = vld [vmem:[%s1188 + $0x14] sm:$0xf]
    %v1195 = vld [vmem:[%s1188 + $0x18] sm:$0xf]
    %v1196 = vld [vmem:[%s1188 + $0x1c] sm:$0xf]
    %v1197 = vld [vmem:[%s1188 + $0x20] sm:$0xf]
    %v1198 = vld [vmem:[%s1188 + $0x24] sm:$0xf]
    %v1199 = vld [vmem:[%s1188 + $0x28] sm:$0xf]
    %v1200 = vld [vmem:[%s1188 + $0x2c] sm:$0xf]
    %v1201 = vld [vmem:[%s1188 + $0x30] sm:$0xf]
    %v1202 = vld [vmem:[%s1188 + $0x34] sm:$0xf]
    %v1203 = vld [vmem:[%s1188 + $0x38] sm:$0xf]
    %v1204 = vld [vmem:[%s1188 + $0x3c] sm:$0xf]
    %v1205 = vpack.c.bf16 %v1187, %v1187
    %v1206 = vperm.slane %v94, 2
    %v1223 = vunpack.c.l.b16 %v1189
    %v1224 = vunpack.c.l.b16 %v1190
    %v1225 = vunpack.c.l.b16 %v1191
    %v1226 = vunpack.c.l.b16 %v1192
    %v1227 = vunpack.c.l.b16 %v1193
    %v1228 = vunpack.c.l.b16 %v1194
    %v1229 = vunpack.c.l.b16 %v1195
    %v1230 = vunpack.c.l.b16 %v1196
    %v1231 = vunpack.c.l.b16 %v1197
    %v1232 = vunpack.c.l.b16 %v1198
    %v1233 = vunpack.c.l.b16 %v1199
    %v1234 = vunpack.c.l.b16 %v1200
    %v1235 = vunpack.c.l.b16 %v1201
    %v1236 = vunpack.c.l.b16 %v1202
    %v1237 = vunpack.c.l.b16 %v1203
    %v1238 = vunpack.c.l.b16 %v1204
    %v1239 = vpack.c.b16 %v1224, %v1223
    %v1240 = vpack.c.b16 %v1226, %v1225
    %v1241 = vpack.c.b16 %v1228, %v1227
    %v1242 = vpack.c.b16 %v1230, %v1229
    %v1243 = vpack.c.b16 %v1232, %v1231
    %v1244 = vpack.c.b16 %v1234, %v1233
    %v1245 = vpack.c.b16 %v1236, %v1235
    %v1246 = vpack.c.b16 %v1238, %v1237
    %1255 = vmatpush.bf16.msra.mxu0 %v1246
    %1256 = vmatpush.bf16.msra.mxu0 %v1245
    %1257 = vmatpush.bf16.msra.mxu0 %v1244
    %1258 = vmatpush.bf16.msra.mxu0 %v1243
    %1259 = vmatpush.bf16.msra.mxu0 %v1242
    %1260 = vmatpush.bf16.msra.mxu0 %v1241
    %1261 = vmatpush.bf16.msra.mxu0 %v1240
    %1262 = vmatpush.bf16.msra.mxu0 %v1239
    %1263 = vmatmul.bf16.gmra.mxu0 %v1205
    %v1264 = vpop.f32.mrf.mxu0
    %v1265 = vadd.f32 %v1206, %v1264
    %v1266 = vpop.f32.mrf.mxu0
    %1267 = vdwg.mxu0
    %v1268 = vmax.f32 %v1265, 0.0
    %v1269 = vtanh.pop %v1268
    %1270 = vst [vmem:[#allocation11] sm:$0x3] %v1269
    // Predicated region
    $region42: #{tpu_custom_call.1} parent=1 // pred_check
      _
    $region43: #{tpu_custom_call.1} parent=1 // pred_check_branch
      %1272 = sbr.rel (0) target = $region45
    $region44: #{tpu_custom_call.1} parent=1 // pred_region
      %1274 = vsyncadd [#allocation4], 0
      %s1276 = sshll.u32 [#allocation11], 4
      %s1277 = int_to_ptr.vmem [resolvable:$true] %s1276
      %s1278 = sshll.u32 %s5, 4
      %s1279 = int_to_ptr.hbm [resolvable:$true] %s1278
      %1281 = dma.vmem_to_hbm [thread:$0]  %s1277, 32, %s1279, [#allocation4]
    $region45: #{tpu_custom_call.1} parent=1 // pred_fallthru
      _
    // Predicated region
    $region46: #{tpu_custom_call.1} parent=1 // pred_check
      _
    $region47: #{tpu_custom_call.1} parent=1 // pred_check_branch
      %1283 = sbr.rel (0) target = $region49
    $region48: #{tpu_custom_call.1} parent=1 // pred_region
      %1285 = dma.done [#allocation4], 32
    $region49: #{tpu_custom_call.1} parent=1 // pred_fallthru
      _
    %1286 = vsyncpa [#allocation3], 1
    %1287 = vsyncpa [#allocation6], 1
    %1288 = vsyncpa [#allocation9], 1
    %1289 = vsyncpa [#allocation4], 1

</llo_original>
